<compile_context>
chip_gen: v5e
topology: v5e:2x2
jax: 0.10.0
libtpu: 0.0.40
codegen_flags: <defaults>
</compile_context>

<pallas_src>
import jax
import jax.numpy as jnp
from jax.experimental import pallas as pl
from jax.experimental.pallas import tpu as pltpu


def _round_up(n, m):
    return ((n + m - 1) // m) * m


def _residual_linear_kernel(x_ref, w_ref, b_ref, o_ref):
    # out = fn(x) + x, with fn(x) = x @ W + b
    x = x_ref[...]                                     # (TM, Hp) f32
    fn_x = jnp.dot(
        x.astype(w_ref.dtype),                         # bf16 operands -> MXU
        w_ref[...],
        preferred_element_type=jnp.float32,            # f32 accumulation
    )
    o_ref[...] = (fn_x + b_ref[...] + x).astype(o_ref.dtype)


def residual_linear(x, w, b, *, tm=None):
    """x: [B, S, H], w: [H, H], b: [H] -> [B, S, H]."""
    B, S, H = x.shape
    M = B * S
    Hp = _round_up(H, 128)                             # lane-dense last dim

    # --- pick the row tile TM -------------------------------------------
    if tm is None:
        # Double-buffered x (f32) + out (f32) tiles must fit a conservative
        # VMEM budget that also works on v7x (64 MiB physical).
        budget = 24 * 1024 * 1024
        bytes_per_row = Hp * 4 * 2 * 2                 # x + out, f32, 2 bufs
        tm_cap = max(8, (budget // bytes_per_row) // 8 * 8)
        tm = min(512, _round_up(M, 8), tm_cap)
    tm = max(8, (tm // 8) * 8)

    Mp = _round_up(M, tm)                              # pad M to tile multiple
    grid_m = Mp // tm

    # --- pad / cast operands in the wrapper ------------------------------
    x2 = jnp.pad(x.reshape(M, H).astype(jnp.float32),
                 ((0, Mp - M), (0, Hp - H)))
    wp = jnp.pad(w, ((0, Hp - H), (0, Hp - H))).astype(jnp.bfloat16)
    bp = jnp.pad(b, (0, Hp - H)).reshape(1, Hp).astype(jnp.float32)

    # --- VMEM limit sized to the chosen tiles (with headroom) -------------
    vmem_bytes = (
        2 * tm * Hp * 4        # x tiles (double-buffered)
        + 2 * tm * Hp * 4      # out tiles (double-buffered)
        + 2 * Hp * Hp * 2      # bf16 W (worst case two buffers)
        + 2 * Hp * 4           # bias
    )
    vmem_limit = int(min(96 * 1024 * 1024,
                         max(16 * 1024 * 1024, vmem_bytes + (4 << 20))))

    cost = pl.CostEstimate(
        flops=2 * Mp * Hp * Hp,
        transcendentals=0,
        bytes_accessed=Mp * Hp * 4 * 2 + Hp * Hp * 2 + Hp * 4,
    )

    out2 = pl.pallas_call(
        _residual_linear_kernel,
        out_shape=jax.ShapeDtypeStruct((Mp, Hp), jnp.float32),
        grid_spec=pltpu.PrefetchScalarGridSpec(
            num_scalar_prefetch=0,
            grid=(grid_m,),
            in_specs=[
                pl.BlockSpec((tm, Hp), lambda i: (i, 0)),   # x tile
                pl.BlockSpec((Hp, Hp), lambda i: (0, 0)),   # W (resident)
                pl.BlockSpec((1, Hp), lambda i: (0, 0)),    # bias (resident)
            ],
            out_specs=pl.BlockSpec((tm, Hp), lambda i: (i, 0)),
        ),
        compiler_params=pltpu.CompilerParams(
            dimension_semantics=("parallel",),
            vmem_limit_bytes=vmem_limit,
        ),
        cost_estimate=cost,
    )(x2, wp, bp)

    return out2[:M, :H].reshape(B, S, H).astype(x.dtype)


if __name__ == "__main__":
    B, S, H = 2, 8, 32
    key = jax.random.PRNGKey(0)
    kx, kw, kb = jax.random.split(key, 3)

    x = jax.random.normal(kx, (B, S, H), dtype=jnp.float32)
    # Deterministic "Linear" params (matches nn.Linear(H, H) shapes).
    w = jax.random.normal(kw, (H, H), dtype=jnp.float32) * 0.05
    b = jax.random.normal(kb, (H,), dtype=jnp.float32) * 0.05

    out = residual_linear(x, w, b)
    jax.block_until_ready(out)

    # sanity check vs. plain f32 JAX reference (loosened tolerance because
    # the kernel feeds the MXU bf16 operands with f32 accumulation).
    ref = jnp.einsum("bsh,hk->bsk", x, w) + b + x
    assert jnp.allclose(out, ref, atol=2e-2, rtol=2e-2)

    print("KERNEL_OK")
</pallas_src>

<mosaic_0001>
module attributes {stable_mosaic.version = 11 : i64} {
  func.func @_residual_linear_kernel(%arg0: i32, %arg1: memref<16x128xf32, #tpu.memory_space<vmem>>, %arg2: memref<128x128xbf16, #tpu.memory_space<vmem>>, %arg3: memref<1x128xf32, #tpu.memory_space<vmem>>, %arg4: memref<16x128xf32, #tpu.memory_space<vmem>>) attributes {dimension_semantics = [#tpu.dimension_semantics<parallel>], iteration_bounds = array<i64: 1>, scalar_prefetch = 0 : i64, scratch_operands = 0 : i64, tpu.core_type = #tpu.core_type<tc>, window_params = [{transform_indices = @transform_0, window_bounds = array<i64: 16, 128>}, {pipeline_mode = #tpu.pipeline_mode<synchronous>, transform_indices = @transform_1, window_bounds = array<i64: 128, 128>}, {pipeline_mode = #tpu.pipeline_mode<synchronous>, transform_indices = @transform_2, window_bounds = array<i64: 1, 128>}, {transform_indices = @transform_3, window_bounds = array<i64: 16, 128>}]} {
    %c0 = arith.constant 0 : index
    %c0_0 = arith.constant 0 : index
    %0 = vector.load %arg1[%c0, %c0_0] : memref<16x128xf32, #tpu.memory_space<vmem>>, vector<16x128xf32>
    %1 = arith.truncf %0 : vector<16x128xf32> to vector<16x128xbf16>
    %c0_1 = arith.constant 0 : index
    %c0_2 = arith.constant 0 : index
    %2 = vector.load %arg2[%c0_1, %c0_2] : memref<128x128xbf16, #tpu.memory_space<vmem>>, vector<128x128xbf16>
    %cst = arith.constant dense<0.000000e+00> : vector<16x128xf32>
    %3 = tpu.matmul %1, %2, %cst {dimension_numbers = #tpu.dot_dimension_numbers<[1], [0], [0], [1], [0, 0, 1, 1], [], []>} : vector<16x128xbf16>, vector<128x128xbf16>, vector<16x128xf32> -> vector<16x128xf32>
    %c0_3 = arith.constant 0 : index
    %c0_4 = arith.constant 0 : index
    %4 = vector.load %arg3[%c0_3, %c0_4] : memref<1x128xf32, #tpu.memory_space<vmem>>, vector<1x128xf32>
    %5 = vector.broadcast %4 : vector<1x128xf32> to vector<16x128xf32>
    %6 = arith.addf %3, %5 : vector<16x128xf32>
    %7 = arith.addf %6, %0 : vector<16x128xf32>
    %c0_5 = arith.constant 0 : index
    %c0_6 = arith.constant 0 : index
    %8 = vector.load %arg4[%c0_5, %c0_6] : memref<16x128xf32, #tpu.memory_space<vmem>>, vector<16x128xf32>
    tpu.vector_store %arg4[%c0_5, %c0_6], %7 {strides = array<i32>} : memref<16x128xf32, #tpu.memory_space<vmem>>, vector<16x128xf32>,
    return
  }
  func.func @transform_0(%arg0: i32) -> (i32, i32) {
    %c0_i32 = arith.constant 0 : i32
    %c0_i32_0 = arith.constant 0 : i32
    return %arg0, %c0_i32 : i32, i32
  }
  func.func @transform_1(%arg0: i32) -> (i32, i32) {
    %c0_i32 = arith.constant 0 : i32
    %c0_i32_0 = arith.constant 0 : i32
    %c0_i32_1 = arith.constant 0 : i32
    return %c0_i32, %c0_i32_0 : i32, i32
  }
  func.func @transform_2(%arg0: i32) -> (i32, i32) {
    %c0_i32 = arith.constant 0 : i32
    %c0_i32_0 = arith.constant 0 : i32
    %c0_i32_1 = arith.constant 0 : i32
    return %c0_i32, %c0_i32_0 : i32, i32
  }
  func.func @transform_3(%arg0: i32) -> (i32, i32) {
    %c0_i32 = arith.constant 0 : i32
    %c0_i32_0 = arith.constant 0 : i32
    return %arg0, %c0_i32 : i32, i32
  }
}

</mosaic_0001>

<llo_original>
// kernel: tpu_custom_call.1
$region0: #{tpu_custom_call.1}
  #allocation0 [shape = 'u32[]', space=smem, size = 0x4, offset = 0x4, fixed_abs, tag = 'smem constant byte address 0x4 - core index']
  #allocation1 [shape = 'u32[72,128]{1,0:T(1,128)}', space=vmem, size = 0x9000, scoped, tag = 'internal scratch']
  %s0 = inlined_call_operand.hbm [shape: f32[16,128], index: 0, kind: input, shape index: {}]
  %s1 = inlined_call_operand.hbm [shape: bf16[128,128], index: 1, kind: input, shape index: {}]
  %s2 = inlined_call_operand.vmem [shape: f32[1,128], index: 2, kind: input, shape index: {}]
  %s3 = inlined_call_operand.hbm [shape: f32[16,128], index: 3, kind: output, shape index: {}]
  %s4 = sld [smem:[#allocation0]]
  $region30: #{tpu_custom_call.1} parent=0
    _
  %s6 = ssub.s32 1, %s4
  %s7 = scalar_select 0, %s6, %s4
  $region1: #{tpu_custom_call.1} parent=0
    #allocation2 [shape = 'u8[8192]{0}', space=vmem, size = 0x2000, scoped, tag = 'input window, operand 0, single buffered']
    #allocation3 [shape = 's32[1]{0}', space=sflag, size = 0x4, scoped, tag = 'scoped memory for tpu_custom_call.1']
    #allocation4 [shape = 's32[1]{0}', space=sflag, size = 0x4, scoped, tag = 'scoped memory for tpu_custom_call.1']
    #allocation5 [shape = 'u8[32768]{0}', space=vmem, size = 0x8000, scoped, tag = 'input window, operand 1, single buffered']
    #allocation6 [shape = 's32[1]{0}', space=sflag, size = 0x4, scoped, tag = 'scoped memory for tpu_custom_call.1']
    #allocation7 [shape = 'u8[8192]{0}', space=vmem, size = 0x2000, scoped, tag = 'output window, operand 0, single buffered']
    %8 = vsyncpa [#allocation3], 0
    %9 = vsyncpa [#allocation6], 0
    %10 = vsyncpa [#allocation4], 0
    // Predicated region
    $region2: #{tpu_custom_call.1} parent=1 // pred_check
      _
    $region3: #{tpu_custom_call.1} parent=1 // pred_check_branch
      %12 = sbr.rel (0) target = $region5
    $region4: #{tpu_custom_call.1} parent=1 // pred_region
      %14 = vsyncadd [#allocation3], 0
      %s15 = sshll.u32 %s0, 4
      %s16 = int_to_ptr.hbm [resolvable:$true] %s15
      %s17 = sshll.u32 [#allocation2], 4
      %s18 = int_to_ptr.vmem [resolvable:$true] %s17
      %23 = dma.hbm_to_vmem [thread:$0]  %s16, 256, %s18, [#allocation3], 128, 128, 8
    $region5: #{tpu_custom_call.1} parent=1 // pred_fallthru
      _
    // Predicated region
    $region6: #{tpu_custom_call.1} parent=1 // pred_check
      _
    $region7: #{tpu_custom_call.1} parent=1 // pred_check_branch
      %25 = sbr.rel (0) target = $region9
    $region8: #{tpu_custom_call.1} parent=1 // pred_region
      %27 = vsyncadd [#allocation6], 0
      %s28 = sshll.u32 %s1, 4
      %s29 = int_to_ptr.hbm [resolvable:$true] %s28
      %s30 = sshll.u32 [#allocation5], 4
      %s31 = int_to_ptr.vmem [resolvable:$true] %s30
      %36 = dma.hbm_to_vmem [thread:$0]  %s29, 1024, %s31, [#allocation6], 64, 64, 4
    $region9: #{tpu_custom_call.1} parent=1 // pred_fallthru
      _
    // Predicated region
    $region10: #{tpu_custom_call.1} parent=1 // pred_check
      _
    $region11: #{tpu_custom_call.1} parent=1 // pred_check_branch
      %38 = sbr.rel (0) target = $region13
    $region12: #{tpu_custom_call.1} parent=1 // pred_region
      _
    $region13: #{tpu_custom_call.1} parent=1 // pred_fallthru
      _
    // Predicated region
    $region14: #{tpu_custom_call.1} parent=1 // pred_check
      _
    $region15: #{tpu_custom_call.1} parent=1 // pred_check_branch
      %40 = sbr.rel (0) target = $region17
    $region16: #{tpu_custom_call.1} parent=1 // pred_region
      %42 = dma.done [#allocation3], 256
    $region17: #{tpu_custom_call.1} parent=1 // pred_fallthru
      _
    // Predicated region
    $region18: #{tpu_custom_call.1} parent=1 // pred_check
      _
    $region19: #{tpu_custom_call.1} parent=1 // pred_check_branch
      %44 = sbr.rel (0) target = $region21
    $region20: #{tpu_custom_call.1} parent=1 // pred_region
      %46 = dma.done [#allocation6], 1024
    $region21: #{tpu_custom_call.1} parent=1 // pred_fallthru
      _
    %v47 = vld [vmem:[#allocation2] sm:$0xff]
    %v48 = vld [vmem:[#allocation2 + $0x8] sm:$0xff]
    %v49 = vpack.c.bf16 %v48, %v47
    %v50 = vld [vmem:[#allocation5] sm:$0xf]
    %v51 = vld [vmem:[#allocation5 + $0x4] sm:$0xf]
    %v52 = vld [vmem:[#allocation5 + $0x8] sm:$0xf]
    %v53 = vld [vmem:[#allocation5 + $0xc] sm:$0xf]
    %v54 = vld [vmem:[#allocation5 + $0x10] sm:$0xf]
    %v55 = vld [vmem:[#allocation5 + $0x14] sm:$0xf]
    %v56 = vld [vmem:[#allocation5 + $0x18] sm:$0xf]
    %v57 = vld [vmem:[#allocation5 + $0x1c] sm:$0xf]
    %v58 = vld [vmem:[#allocation5 + $0x20] sm:$0xf]
    %v59 = vld [vmem:[#allocation5 + $0x24] sm:$0xf]
    %v60 = vld [vmem:[#allocation5 + $0x28] sm:$0xf]
    %v61 = vld [vmem:[#allocation5 + $0x2c] sm:$0xf]
    %v62 = vld [vmem:[#allocation5 + $0x30] sm:$0xf]
    %v63 = vld [vmem:[#allocation5 + $0x34] sm:$0xf]
    %v64 = vld [vmem:[#allocation5 + $0x38] sm:$0xf]
    %v65 = vld [vmem:[#allocation5 + $0x3c] sm:$0xf]
    %v66 = vld [vmem:[%s2] sm:$0x1]
    %v68 = vperm.slane %v66, 0
    %v86 = vunpack.c.l.b16 %v50
    %v87 = vunpack.c.l.b16 %v51
    %v88 = vunpack.c.l.b16 %v52
    %v89 = vunpack.c.l.b16 %v53
    %v90 = vunpack.c.l.b16 %v54
    %v91 = vunpack.c.l.b16 %v55
    %v92 = vunpack.c.l.b16 %v56
    %v93 = vunpack.c.l.b16 %v57
    %v94 = vunpack.c.l.b16 %v58
    %v95 = vunpack.c.l.b16 %v59
    %v96 = vunpack.c.l.b16 %v60
    %v97 = vunpack.c.l.b16 %v61
    %v98 = vunpack.c.l.b16 %v62
    %v99 = vunpack.c.l.b16 %v63
    %v100 = vunpack.c.l.b16 %v64
    %v101 = vunpack.c.l.b16 %v65
    %v102 = vpack.c.b16 %v87, %v86
    %v103 = vpack.c.b16 %v89, %v88
    %v104 = vpack.c.b16 %v91, %v90
    %v105 = vpack.c.b16 %v93, %v92
    %v106 = vpack.c.b16 %v95, %v94
    %v107 = vpack.c.b16 %v97, %v96
    %v108 = vpack.c.b16 %v99, %v98
    %v109 = vpack.c.b16 %v101, %v100
    %118 = vmatpush.bf16.msra.mxu0 %v109
    %119 = vmatpush.bf16.msra.mxu0 %v108
    %120 = vmatpush.bf16.msra.mxu0 %v107
    %121 = vmatpush.bf16.msra.mxu0 %v106
    %122 = vmatpush.bf16.msra.mxu0 %v105
    %123 = vmatpush.bf16.msra.mxu0 %v104
    %124 = vmatpush.bf16.msra.mxu0 %v103
    %125 = vmatpush.bf16.msra.mxu0 %v102
    %126 = vmatmul.bf16.gmra.mxu0 %v49
    %v127 = vpop.f32.mrf.mxu0
    %v128 = vadd.f32 %v68, %v127
    %v129 = vpop.f32.mrf.mxu0
    %v130 = vadd.f32 %v68, %v129
    %131 = vdwg.mxu0
    %v132 = vadd.f32 %v128, %v47
    %v133 = vadd.f32 %v130, %v48
    %134 = vst [vmem:[#allocation7] sm:$0xff] %v132
    %135 = vst [vmem:[#allocation7 + $0x8] sm:$0xff] %v133
    // Predicated region
    $region22: #{tpu_custom_call.1} parent=1 // pred_check
      _
    $region23: #{tpu_custom_call.1} parent=1 // pred_check_branch
      %137 = sbr.rel (0) target = $region25
    $region24: #{tpu_custom_call.1} parent=1 // pred_region
      %139 = vsyncadd [#allocation4], 0
      %s140 = sshll.u32 [#allocation7], 4
      %s141 = int_to_ptr.vmem [resolvable:$true] %s140
      %s142 = sshll.u32 %s3, 4
      %s143 = int_to_ptr.hbm [resolvable:$true] %s142
      %148 = dma.vmem_to_hbm [thread:$0]  %s141, 256, %s143, [#allocation4], 128, 128, 8
    $region25: #{tpu_custom_call.1} parent=1 // pred_fallthru
      _
    // Predicated region
    $region26: #{tpu_custom_call.1} parent=1 // pred_check
      _
    $region27: #{tpu_custom_call.1} parent=1 // pred_check_branch
      %150 = sbr.rel (0) target = $region29
    $region28: #{tpu_custom_call.1} parent=1 // pred_region
      %152 = dma.done [#allocation4], 256
    $region29: #{tpu_custom_call.1} parent=1 // pred_fallthru
      _
    %153 = vsyncpa [#allocation3], 1
    %154 = vsyncpa [#allocation6], 1
    %155 = vsyncpa [#allocation4], 1

</llo_original>
